<compile_context>
chip_gen: v5e
topology: v5e:2x2
jax: 0.10.0
libtpu: 0.0.40
codegen_flags: <defaults>
</compile_context>

<pallas_src>
import functools

import jax
import jax.numpy as jnp
from jax.experimental import pallas as pl
from jax.experimental.pallas import tpu as pltpu  # noqa: F401  (TPU backend)


# ----------------------------------------------------------------------------
# Kernel: full Siamese VAE forward (both branches) in one invocation.
# ----------------------------------------------------------------------------
def _ae_fused_kernel(act_ref, wmain_ref, wdb_ref, out_ref, *, B, D, H, Z):
    twoD, twoH, twoZ, fourZ = 2 * D, 2 * H, 2 * Z, 4 * Z

    # Static row offsets into the packed main-weight slab (352, 64).
    o_e1 = 0
    o_e2 = o_e1 + twoD          # encoder Linear 1 rows: [o_e1, o_e2)
    o_hd = o_e2 + twoH          # encoder Linear 2 rows: [o_e2, o_hd)
    o_d1 = o_hd + twoH          # fused mu/logvar head rows: [o_hd, o_d1)
    o_d2 = o_d1 + twoZ          # decoder Linear 1 rows: [o_d1, o_d2)
    o_end = o_d2 + twoH         # decoder Linear 2 rows: [o_d2, o_end)

    # Bias table rows sit under the decoder-3 weight inside the wdb slab.
    ob = twoH

    x = act_ref[0:B, :]                  # (B, 2D)  = [x1 | x2]
    eps = act_ref[B:2 * B, 0:twoZ]       # (B, 2Z)  = [eps1 | eps2]

    def bdot(a, w):
        # bf16 operands, f32 accumulation: MXU-native path, fewer serial passes.
        return jnp.dot(a.astype(jnp.bfloat16), w.astype(jnp.bfloat16),
                       preferred_element_type=jnp.float32)

    # ---- encoder (both branches via block-diagonal weights) ----
    h = bdot(x, wmain_ref[o_e1:o_e2, 0:twoH]) + wdb_ref[ob + 0:ob + 1, 0:twoH]
    h = jnp.maximum(h, 0.0)
    h = bdot(h, wmain_ref[o_e2:o_hd, 0:twoH]) + wdb_ref[ob + 1:ob + 2, 0:twoH]
    h = jnp.maximum(h, 0.0)

    # ---- fused mu/logvar heads: columns [mu1 | mu2 | lv1 | lv2].
    #      Kept in f32 so mu/logvar/z stay close to the f32 reference.
    heads = jnp.dot(h, wmain_ref[o_hd:o_d1, 0:fourZ],
                    preferred_element_type=jnp.float32)
    heads = heads + wdb_ref[ob + 2:ob + 3, 0:fourZ]
    mu = heads[:, 0:twoZ]                # (B, 2Z) = [mu1 | mu2]
    logvar = heads[:, twoZ:fourZ]        # (B, 2Z) = [lv1 | lv2]

    # ---- reparameterize: z = mu + eps * exp(0.5 * logvar) ----
    z = mu + eps * jnp.exp(0.5 * logvar)     # (B, 2Z) = [z1 | z2]

    # ---- decoder: ReLU -> Linear -> ReLU -> Linear -> ReLU -> Linear -> Sigmoid
    d = jnp.maximum(z, 0.0)
    d = bdot(d, wmain_ref[o_d1:o_d2, 0:twoH]) + wdb_ref[ob + 3:ob + 4, 0:twoH]
    d = jnp.maximum(d, 0.0)
    d = bdot(d, wmain_ref[o_d2:o_end, 0:twoH]) + wdb_ref[ob + 4:ob + 5, 0:twoH]
    d = jnp.maximum(d, 0.0)
    logits = bdot(d, wdb_ref[0:twoH, 0:twoD]) + wdb_ref[ob + 5:ob + 6, 0:twoD]

    # ---- single lane-dense output slab (B, 4D): direct slice stores, no concat
    out_ref[:, 0:twoD] = jax.nn.sigmoid(logits)                      # unmasked
    out_ref[:, twoD:2 * twoD] = jnp.zeros((B, twoD), jnp.float32)    # det. pad
    out_ref[:, twoD:twoD + twoZ] = z                                 # [z1|z2]
    out_ref[:, twoD + twoZ:twoD + twoZ + fourZ] = heads              # [mu|lv]


# ----------------------------------------------------------------------------
# Parameter / input packing (done once, outside the kernel call).
# ----------------------------------------------------------------------------
def _block_diag2(a, b):
    ia, oa = a.shape
    ib, ob = b.shape
    top = jnp.concatenate([a, jnp.zeros((ia, ob), a.dtype)], axis=1)
    bot = jnp.concatenate([jnp.zeros((ib, oa), b.dtype), b], axis=1)
    return jnp.concatenate([top, bot], axis=0)


def pack_params(p1, p2, D, H, Z):
    """Pack both branches' params into 2 slabs: w_main (352,64), wdb (72,128)."""
    (ew1_1, eb1_1, ew2_1, eb2_1, muw_1, mub_1, lvw_1, lvb_1,
     dw1_1, db1_1, dw2_1, db2_1, dw3_1, db3_1) = p1
    (ew1_2, eb1_2, ew2_2, eb2_2, muw_2, mub_2, lvw_2, lvb_2,
     dw1_2, db1_2, dw2_2, db2_2, dw3_2, db3_2) = p2

    w_e1 = _block_diag2(ew1_1, ew1_2)                              # (2D, 2H)
    w_e2 = _block_diag2(ew2_1, ew2_2)                              # (2H, 2H)
    w_hd = jnp.concatenate([_block_diag2(muw_1, muw_2),
                            _block_diag2(lvw_1, lvw_2)], axis=1)   # (2H, 4Z)
    w_d1 = _block_diag2(dw1_1, dw1_2)                              # (2Z, 2H)
    w_d2 = _block_diag2(dw2_1, dw2_2)                              # (2H, 2H)
    w_d3 = _block_diag2(dw3_1, dw3_2)                              # (2H, 2D)

    wcol = max(2 * H, 4 * Z)

    def padc(w):
        return jnp.pad(w, ((0, 0), (0, wcol - w.shape[1])))

    w_main = jnp.concatenate(
        [padc(w_e1), padc(w_e2), padc(w_hd), padc(w_d1), padc(w_d2)], axis=0)
    # TODO(synk): optional lane-dense repack of w_main to 128 columns (review
    # item marked "measure before committing") left as-is.

    bw = 2 * D
    assert bw >= wcol

    def padb(b):
        return jnp.pad(b, ((0, 0), (0, bw - b.shape[1])))

    b_e1 = jnp.concatenate([eb1_1, eb1_2], axis=1)                 # (1, 2H)
    b_e2 = jnp.concatenate([eb2_1, eb2_2], axis=1)                 # (1, 2H)
    b_hd = jnp.concatenate([mub_1, mub_2, lvb_1, lvb_2], axis=1)   # (1, 4Z)
    b_d1 = jnp.concatenate([db1_1, db1_2], axis=1)                 # (1, 2H)
    b_d2 = jnp.concatenate([db2_1, db2_2], axis=1)                 # (1, 2H)
    b_d3 = jnp.concatenate([db3_1, db3_2], axis=1)                 # (1, 2D)

    bias = jnp.concatenate(
        [padb(b_e1), padb(b_e2), padb(b_hd), padb(b_d1), padb(b_d2), padb(b_d3),
         jnp.zeros((2, bw), jnp.float32)], axis=0)                 # (8, 2D)

    # Decoder-3 weight stacked over the bias table: one (2H + 8, 2D) DMA slab.
    wdb = jnp.concatenate([w_d3, bias], axis=0)
    return w_main, wdb


def pack_inputs(x1, x2, eps1, eps2):
    """One (2B, 2D) activation slab: rows [0,B)=packed x, rows [B,2B)=padded eps."""
    B, D = x1.shape
    Z = eps1.shape[1]
    x_packed = jnp.concatenate([x1, x2], axis=1)          # (B, 2D)
    eps_packed = jnp.concatenate([eps1, eps2], axis=1)    # (B, 2Z)
    eps_padded = jnp.pad(eps_packed, ((0, 0), (0, 2 * D - 2 * Z)))
    return jnp.concatenate([x_packed, eps_padded], axis=0)


# ----------------------------------------------------------------------------
# Forward wrappers.
# ----------------------------------------------------------------------------
@functools.partial(jax.jit, static_argnames=("B", "D", "H", "Z"))
def siamese_ae_forward_packed(act_slab, w_main, wdb, *, B, D, H, Z):
    """Packed-in / packed-out entry point (3 input DMAs, 1 output DMA)."""
    kernel = functools.partial(_ae_fused_kernel, B=B, D=D, H=H, Z=Z)
    return pl.pallas_call(
        kernel,
        out_shape=jax.ShapeDtypeStruct((B, 4 * D), jnp.float32),
    )(act_slab, w_main, wdb)


@functools.partial(jax.jit, static_argnames=("D", "H", "Z"))
def siamese_ae_forward(x1, x2, eps1, eps2, w_main, wdb, *, D, H, Z):
    """Convenience wrapper that packs inputs / splits the packed output.
    (In a real pipeline, keep data packed and call the *_packed entry point.)"""
    B = x1.shape[0]
    act = pack_inputs(x1, x2, eps1, eps2)
    out = siamese_ae_forward_packed(act, w_main, wdb, B=B, D=D, H=H, Z=Z)
    twoD = 2 * D
    xhat1, xhat2 = out[:, 0:D], out[:, D:twoD]
    z1 = out[:, twoD + 0 * Z:twoD + 1 * Z]
    z2 = out[:, twoD + 1 * Z:twoD + 2 * Z]
    mu1 = out[:, twoD + 2 * Z:twoD + 3 * Z]
    mu2 = out[:, twoD + 3 * Z:twoD + 4 * Z]
    lv1 = out[:, twoD + 4 * Z:twoD + 5 * Z]
    lv2 = out[:, twoD + 5 * Z:twoD + 6 * Z]
    return z1, z2, xhat1, xhat2, mu1, mu2, lv1, lv2


# ----------------------------------------------------------------------------
# Deterministic parameter construction (PyTorch Linear: y = x @ W.T + b;
# weights stored pre-transposed here as (in, out)).
# ----------------------------------------------------------------------------
def make_linear(key, fan_in, fan_out):
    kw, kb = jax.random.split(key)
    bound = 1.0 / jnp.sqrt(jnp.float32(fan_in))
    w = jax.random.uniform(kw, (fan_in, fan_out), jnp.float32, -bound, bound)
    b = jax.random.uniform(kb, (1, fan_out), jnp.float32, -bound, bound)
    return w, b


def make_branch_params(key, input_dim, hidden_dim, z_dim):
    ks = jax.random.split(key, 7)
    ew1, eb1 = make_linear(ks[0], input_dim, hidden_dim)   # encoder Linear 1
    ew2, eb2 = make_linear(ks[1], hidden_dim, hidden_dim)  # encoder Linear 2
    muw, mub = make_linear(ks[2], hidden_dim, z_dim)       # mu head
    lvw, lvb = make_linear(ks[3], hidden_dim, z_dim)       # logvar head
    dw1, db1 = make_linear(ks[4], z_dim, hidden_dim)       # decoder Linear 1
    dw2, db2 = make_linear(ks[5], hidden_dim, hidden_dim)  # decoder Linear 2
    dw3, db3 = make_linear(ks[6], hidden_dim, input_dim)   # decoder Linear 3
    return [ew1, eb1, ew2, eb2, muw, mub, lvw, lvb,
            dw1, db1, dw2, db2, dw3, db3]


def branch_reference(x, eps, p):
    """Pure-JAX f32 reference for one branch (mirrors the PyTorch forward)."""
    (ew1, eb1, ew2, eb2, muw, mub, lvw, lvb,
     dw1, db1, dw2, db2, dw3, db3) = p
    h = jnp.maximum(x @ ew1 + eb1, 0.0)
    h = jnp.maximum(h @ ew2 + eb2, 0.0)
    mu = h @ muw + mub
    logvar = h @ lvw + lvb
    z = mu + eps * jnp.exp(0.5 * logvar)
    d = jnp.maximum(z, 0.0)
    d = jnp.maximum(d @ dw1 + db1, 0.0)
    d = jnp.maximum(d @ dw2 + db2, 0.0)
    xhat = jax.nn.sigmoid(d @ dw3 + db3)
    return z, xhat, mu, logvar


if __name__ == "__main__":
    B, INPUT_DIM, HIDDEN_DIM, Z_DIM = 8, 64, 32, 16

    root = jax.random.PRNGKey(0)
    k_x1, k_x2, k_eps1, k_eps2, k_p1, k_p2 = jax.random.split(root, 6)

    x1 = jax.random.normal(k_x1, (B, INPUT_DIM), jnp.float32)
    x2 = jax.random.normal(k_x2, (B, INPUT_DIM), jnp.float32)
    # reparameterization noise (torch.randn_like), drawn deterministically here
    eps1 = jax.random.normal(k_eps1, (B, Z_DIM), jnp.float32)
    eps2 = jax.random.normal(k_eps2, (B, Z_DIM), jnp.float32)

    p1 = make_branch_params(k_p1, INPUT_DIM, HIDDEN_DIM, Z_DIM)
    p2 = make_branch_params(k_p2, INPUT_DIM, HIDDEN_DIM, Z_DIM)

    # Pack both branches' parameters into 2 DMA slabs (done once).
    w_main, wdb = pack_params(p1, p2, INPUT_DIM, HIDDEN_DIM, Z_DIM)

    outs = siamese_ae_forward(x1, x2, eps1, eps2, w_main, wdb,
                              D=INPUT_DIM, H=HIDDEN_DIM, Z=Z_DIM)
    outs = jax.block_until_ready(outs)
    z1, z2, xhat1, xhat2, mu1, mu2, logvar1, logvar2 = outs

    # Correctness check against a pure-JAX f32 per-branch reference.
    # bf16 MXU operands on the encoder/decoder path -> relaxed 2e-2 tolerance
    # (mu/logvar head matmul kept in f32).
    rz1, rxhat1, rmu1, rlv1 = branch_reference(x1, eps1, p1)
    rz2, rxhat2, rmu2, rlv2 = branch_reference(x2, eps2, p2)
    checks = [(z1, rz1), (z2, rz2), (xhat1, rxhat1), (xhat2, rxhat2),
              (mu1, rmu1), (mu2, rmu2), (logvar1, rlv1), (logvar2, rlv2)]
    for got, ref in checks:
        assert got.shape == ref.shape, "shape mismatch vs reference"
        assert jnp.allclose(got, ref, atol=2e-2, rtol=2e-2), "mismatch vs reference"

    print("KERNEL_OK")
</pallas_src>

<mosaic_0001>
module attributes {stable_mosaic.version = 11 : i64} {
  func.func @_ae_fused_kernel(%arg0: memref<16x128xf32, #tpu.memory_space<vmem>>, %arg1: memref<352x64xf32, #tpu.memory_space<vmem>>, %arg2: memref<72x128xf32, #tpu.memory_space<vmem>>, %arg3: memref<8x256xf32, #tpu.memory_space<vmem>>) attributes {dimension_semantics = [], scalar_prefetch = 0 : i64, scratch_operands = 0 : i64, tpu.core_type = #tpu.core_type<tc>} {
    %c0 = arith.constant 0 : index
    %c0_0 = arith.constant 0 : index
    %0 = vector.load %arg0[%c0, %c0_0] : memref<16x128xf32, #tpu.memory_space<vmem>>, vector<8x128xf32>
    %c8 = arith.constant 8 : index
    %c0_1 = arith.constant 0 : index
    %1 = vector.load %arg0[%c8, %c0_1] : memref<16x128xf32, #tpu.memory_space<vmem>>, vector<8x32xf32>
    %c0_2 = arith.constant 0 : index
    %c0_3 = arith.constant 0 : index
    %2 = vector.load %arg1[%c0_2, %c0_3] : memref<352x64xf32, #tpu.memory_space<vmem>>, vector<128x64xf32>
    %3 = arith.truncf %0 : vector<8x128xf32> to vector<8x128xbf16>
    %4 = arith.truncf %2 : vector<128x64xf32> to vector<128x64xbf16>
    %cst = arith.constant dense<0.000000e+00> : vector<8x64xf32>
    %5 = tpu.matmul %3, %4, %cst {dimension_numbers = #tpu.dot_dimension_numbers<[1], [0], [0], [1], [0, 0, 1, 1], [], []>} : vector<8x128xbf16>, vector<128x64xbf16>, vector<8x64xf32> -> vector<8x64xf32>
    %c64 = arith.constant 64 : index
    %c0_4 = arith.constant 0 : index
    %6 = vector.load %arg2[%c64, %c0_4] : memref<72x128xf32, #tpu.memory_space<vmem>>, vector<1x64xf32>
    %7 = vector.broadcast %6 : vector<1x64xf32> to vector<8x64xf32>
    %8 = arith.addf %5, %7 : vector<8x64xf32>
    %cst_5 = arith.constant 0.000000e+00 : f32
    %9 = vector.broadcast %cst_5 : f32 to vector<8x64xf32>
    %10 = arith.maximumf %8, %9 : vector<8x64xf32>
    %c128 = arith.constant 128 : index
    %c0_6 = arith.constant 0 : index
    %11 = vector.load %arg1[%c128, %c0_6] : memref<352x64xf32, #tpu.memory_space<vmem>>, vector<64x64xf32>
    %12 = arith.truncf %10 : vector<8x64xf32> to vector<8x64xbf16>
    %13 = arith.truncf %11 : vector<64x64xf32> to vector<64x64xbf16>
    %cst_7 = arith.constant dense<0.000000e+00> : vector<8x64xf32>
    %14 = tpu.matmul %12, %13, %cst_7 {dimension_numbers = #tpu.dot_dimension_numbers<[1], [0], [0], [1], [0, 0, 1, 1], [], []>} : vector<8x64xbf16>, vector<64x64xbf16>, vector<8x64xf32> -> vector<8x64xf32>
    %c65 = arith.constant 65 : index
    %c0_8 = arith.constant 0 : index
    %15 = vector.load %arg2[%c65, %c0_8] : memref<72x128xf32, #tpu.memory_space<vmem>>, vector<1x64xf32>
    %16 = vector.broadcast %15 : vector<1x64xf32> to vector<8x64xf32>
    %17 = arith.addf %14, %16 : vector<8x64xf32>
    %cst_9 = arith.constant 0.000000e+00 : f32
    %18 = vector.broadcast %cst_9 : f32 to vector<8x64xf32>
    %19 = arith.maximumf %17, %18 : vector<8x64xf32>
    %c192 = arith.constant 192 : index
    %c0_10 = arith.constant 0 : index
    %20 = vector.load %arg1[%c192, %c0_10] : memref<352x64xf32, #tpu.memory_space<vmem>>, vector<64x64xf32>
    %cst_11 = arith.constant dense<0.000000e+00> : vector<8x64xf32>
    %21 = tpu.matmul %19, %20, %cst_11 {dimension_numbers = #tpu.dot_dimension_numbers<[1], [0], [0], [1], [0, 0, 1, 1], [], []>} : vector<8x64xf32>, vector<64x64xf32>, vector<8x64xf32> -> vector<8x64xf32>
    %c66 = arith.constant 66 : index
    %c0_12 = arith.constant 0 : index
    %22 = vector.load %arg2[%c66, %c0_12] : memref<72x128xf32, #tpu.memory_space<vmem>>, vector<1x64xf32>
    %23 = vector.broadcast %22 : vector<1x64xf32> to vector<8x64xf32>
    %24 = arith.addf %21, %23 : vector<8x64xf32>
    %25 = vector.extract_strided_slice %24 {offsets = [0, 0], sizes = [8, 32], strides = [1, 1]} : vector<8x64xf32> to vector<8x32xf32>
    %26 = vector.extract_strided_slice %24 {offsets = [0, 32], sizes = [8, 32], strides = [1, 1]} : vector<8x64xf32> to vector<8x32xf32>
    %cst_13 = arith.constant 5.000000e-01 : f32
    %27 = vector.broadcast %cst_13 : f32 to vector<8x32xf32>
    %28 = arith.mulf %27, %26 : vector<8x32xf32>
    %29 = math.exp %28 : vector<8x32xf32>
    %30 = arith.mulf %1, %29 : vector<8x32xf32>
    %31 = arith.addf %25, %30 : vector<8x32xf32>
    %cst_14 = arith.constant 0.000000e+00 : f32
    %32 = vector.broadcast %cst_14 : f32 to vector<8x32xf32>
    %33 = arith.maximumf %31, %32 : vector<8x32xf32>
    %c256 = arith.constant 256 : index
    %c0_15 = arith.constant 0 : index
    %34 = vector.load %arg1[%c256, %c0_15] : memref<352x64xf32, #tpu.memory_space<vmem>>, vector<32x64xf32>
    %35 = arith.truncf %33 : vector<8x32xf32> to vector<8x32xbf16>
    %36 = arith.truncf %34 : vector<32x64xf32> to vector<32x64xbf16>
    %cst_16 = arith.constant dense<0.000000e+00> : vector<8x64xf32>
    %37 = tpu.matmul %35, %36, %cst_16 {dimension_numbers = #tpu.dot_dimension_numbers<[1], [0], [0], [1], [0, 0, 1, 1], [], []>} : vector<8x32xbf16>, vector<32x64xbf16>, vector<8x64xf32> -> vector<8x64xf32>
    %c67 = arith.constant 67 : index
    %c0_17 = arith.constant 0 : index
    %38 = vector.load %arg2[%c67, %c0_17] : memref<72x128xf32, #tpu.memory_space<vmem>>, vector<1x64xf32>
    %39 = vector.broadcast %38 : vector<1x64xf32> to vector<8x64xf32>
    %40 = arith.addf %37, %39 : vector<8x64xf32>
    %cst_18 = arith.constant 0.000000e+00 : f32
    %41 = vector.broadcast %cst_18 : f32 to vector<8x64xf32>
    %42 = arith.maximumf %40, %41 : vector<8x64xf32>
    %c288 = arith.constant 288 : index
    %c0_19 = arith.constant 0 : index
    %43 = vector.load %arg1[%c288, %c0_19] : memref<352x64xf32, #tpu.memory_space<vmem>>, vector<64x64xf32>
    %44 = arith.truncf %42 : vector<8x64xf32> to vector<8x64xbf16>
    %45 = arith.truncf %43 : vector<64x64xf32> to vector<64x64xbf16>
    %cst_20 = arith.constant dense<0.000000e+00> : vector<8x64xf32>
    %46 = tpu.matmul %44, %45, %cst_20 {dimension_numbers = #tpu.dot_dimension_numbers<[1], [0], [0], [1], [0, 0, 1, 1], [], []>} : vector<8x64xbf16>, vector<64x64xbf16>, vector<8x64xf32> -> vector<8x64xf32>
    %c68 = arith.constant 68 : index
    %c0_21 = arith.constant 0 : index
    %47 = vector.load %arg2[%c68, %c0_21] : memref<72x128xf32, #tpu.memory_space<vmem>>, vector<1x64xf32>
    %48 = vector.broadcast %47 : vector<1x64xf32> to vector<8x64xf32>
    %49 = arith.addf %46, %48 : vector<8x64xf32>
    %cst_22 = arith.constant 0.000000e+00 : f32
    %50 = vector.broadcast %cst_22 : f32 to vector<8x64xf32>
    %51 = arith.maximumf %49, %50 : vector<8x64xf32>
    %c0_23 = arith.constant 0 : index
    %c0_24 = arith.constant 0 : index
    %52 = vector.load %arg2[%c0_23, %c0_24] : memref<72x128xf32, #tpu.memory_space<vmem>>, vector<64x128xf32>
    %53 = arith.truncf %51 : vector<8x64xf32> to vector<8x64xbf16>
    %54 = arith.truncf %52 : vector<64x128xf32> to vector<64x128xbf16>
    %cst_25 = arith.constant dense<0.000000e+00> : vector<8x128xf32>
    %55 = tpu.matmul %53, %54, %cst_25 {dimension_numbers = #tpu.dot_dimension_numbers<[1], [0], [0], [1], [0, 0, 1, 1], [], []>} : vector<8x64xbf16>, vector<64x128xbf16>, vector<8x128xf32> -> vector<8x128xf32>
    %c69 = arith.constant 69 : index
    %c0_26 = arith.constant 0 : index
    %56 = vector.load %arg2[%c69, %c0_26] : memref<72x128xf32, #tpu.memory_space<vmem>>, vector<1x128xf32>
    %57 = vector.broadcast %56 : vector<1x128xf32> to vector<8x128xf32>
    %58 = arith.addf %55, %57 : vector<8x128xf32>
    %59 = arith.negf %58 : vector<8x128xf32>
    %60 = math.exp %59 : vector<8x128xf32>
    %cst_27 = arith.constant 1.000000e+00 : f32
    %61 = vector.broadcast %cst_27 : f32 to vector<8x128xf32>
    %62 = arith.addf %61, %60 : vector<8x128xf32>
    %63 = arith.divf %61, %62 : vector<8x128xf32>
    %c0_28 = arith.constant 0 : index
    %c0_29 = arith.constant 0 : index
    %64 = vector.load %arg3[%c0_28, %c0_29] : memref<8x256xf32, #tpu.memory_space<vmem>>, vector<8x128xf32>
    tpu.vector_store %arg3[%c0_28, %c0_29], %63 {strides = array<i32>} : memref<8x256xf32, #tpu.memory_space<vmem>>, vector<8x128xf32>,
    %cst_30 = arith.constant 0.000000e+00 : f32
    %65 = vector.broadcast %cst_30 : f32 to vector<8x128xf32>
    %c0_31 = arith.constant 0 : index
    %c128_32 = arith.constant 128 : index
    %66 = vector.load %arg3[%c0_31, %c128_32] : memref<8x256xf32, #tpu.memory_space<vmem>>, vector<8x128xf32>
    tpu.vector_store %arg3[%c0_31, %c128_32], %65 {strides = array<i32>} : memref<8x256xf32, #tpu.memory_space<vmem>>, vector<8x128xf32>,
    %c0_33 = arith.constant 0 : index
    %c128_34 = arith.constant 128 : index
    %67 = vector.load %arg3[%c0_33, %c128_34] : memref<8x256xf32, #tpu.memory_space<vmem>>, vector<8x32xf32>
    tpu.vector_store %arg3[%c0_33, %c128_34], %31 {strides = array<i32>} : memref<8x256xf32, #tpu.memory_space<vmem>>, vector<8x32xf32>,
    %c0_35 = arith.constant 0 : index
    %c160 = arith.constant 160 : index
    %68 = vector.load %arg3[%c0_35, %c160] : memref<8x256xf32, #tpu.memory_space<vmem>>, vector<8x64xf32>
    tpu.vector_store %arg3[%c0_35, %c160], %24 {strides = array<i32>} : memref<8x256xf32, #tpu.memory_space<vmem>>, vector<8x64xf32>,
    return
  }
}

</mosaic_0001>

<llo_original>
// kernel: siamese_ae_forward_packed.1
$region0: #{siamese_ae_forward_packed.1}
  #allocation0 [shape = 'u32[]', space=smem, size = 0x4, offset = 0x4, fixed_abs, tag = 'smem constant byte address 0x4 - core index']
  #allocation1 [shape = 'u32[72,128]{1,0:T(1,128)}', space=vmem, size = 0x9000, scoped, tag = 'internal scratch']
  %s0 = inlined_call_operand.vmem [shape: f32[16,128], index: 0, kind: input, shape index: {}]
  %s1 = inlined_call_operand.vmem [shape: f32[352,64], index: 1, kind: input, shape index: {}]
  %s2 = inlined_call_operand.vmem [shape: f32[72,128], index: 2, kind: input, shape index: {}]
  %s3 = inlined_call_operand.hbm [shape: f32[8,256], index: 3, kind: output, shape index: {}]
  %s4 = sld [smem:[#allocation0]]
  $region22: #{siamese_ae_forward_packed.1} parent=0
    _
  %s6 = ssub.s32 1, %s4
  %s7 = scalar_select 0, %s6, %s4
  $region1: #{siamese_ae_forward_packed.1} parent=0
    #allocation2 [shape = 'u8[8192]{0}', space=vmem, size = 0x2000, scoped, tag = 'output window, operand 0, single buffered']
    #allocation3 [shape = 's32[1]{0}', space=sflag, size = 0x4, scoped, tag = 'scoped memory for siamese_ae_forward_packed.1']
    %8 = vsyncpa [#allocation3], 0
    // Predicated region
    $region2: #{siamese_ae_forward_packed.1} parent=1 // pred_check
      _
    $region3: #{siamese_ae_forward_packed.1} parent=1 // pred_check_branch
      %10 = sbr.rel (0) target = $region5
    $region4: #{siamese_ae_forward_packed.1} parent=1 // pred_region
      _
    $region5: #{siamese_ae_forward_packed.1} parent=1 // pred_fallthru
      _
    // Predicated region
    $region6: #{siamese_ae_forward_packed.1} parent=1 // pred_check
      _
    $region7: #{siamese_ae_forward_packed.1} parent=1 // pred_check_branch
      %12 = sbr.rel (0) target = $region9
    $region8: #{siamese_ae_forward_packed.1} parent=1 // pred_region
      _
    $region9: #{siamese_ae_forward_packed.1} parent=1 // pred_fallthru
      _
    // Predicated region
    $region10: #{siamese_ae_forward_packed.1} parent=1 // pred_check
      _
    $region11: #{siamese_ae_forward_packed.1} parent=1 // pred_check_branch
      %14 = sbr.rel (0) target = $region13
    $region12: #{siamese_ae_forward_packed.1} parent=1 // pred_region
      _
    $region13: #{siamese_ae_forward_packed.1} parent=1 // pred_fallthru
      _
    %v16 = vld [vmem:[%s0] sm:$0xff]
    %v17 = vld [vmem:[%s0 + $0x8] sm:$0xff]
    %v18 = vld [vmem:[%s1] sm:$0xff]
    %v19 = vld [vmem:[%s1 + $0x8] sm:$0xff]
    %v20 = vld [vmem:[%s1 + $0x10] sm:$0xff]
    %v21 = vld [vmem:[%s1 + $0x18] sm:$0xff]
    %v22 = vld [vmem:[%s1 + $0x20] sm:$0xff]
    %v23 = vld [vmem:[%s1 + $0x28] sm:$0xff]
    %v24 = vld [vmem:[%s1 + $0x30] sm:$0xff]
    %v25 = vld [vmem:[%s1 + $0x38] sm:$0xff]
    %v26 = vld [vmem:[%s1 + $0x40] sm:$0xff]
    %v27 = vld [vmem:[%s1 + $0x48] sm:$0xff]
    %v28 = vld [vmem:[%s1 + $0x50] sm:$0xff]
    %v29 = vld [vmem:[%s1 + $0x58] sm:$0xff]
    %v30 = vld [vmem:[%s1 + $0x60] sm:$0xff]
    %v31 = vld [vmem:[%s1 + $0x68] sm:$0xff]
    %v32 = vld [vmem:[%s1 + $0x70] sm:$0xff]
    %v33 = vld [vmem:[%s1 + $0x78] sm:$0xff]
    %v34 = vpack.c.bf16 %v16, %v16
    %v35 = vpack.c.bf16 %v19, %v18
    %v36 = vpack.c.bf16 %v21, %v20
    %v37 = vpack.c.bf16 %v23, %v22
    %v38 = vpack.c.bf16 %v25, %v24
    %v39 = vpack.c.bf16 %v27, %v26
    %v40 = vpack.c.bf16 %v29, %v28
    %v41 = vpack.c.bf16 %v31, %v30
    %v42 = vpack.c.bf16 %v33, %v32
    %v43 = vld [vmem:[%s2 + $0x40] sm:$0x1]
    %v44 = vperm.slane %v43, 0
    %45 = vmatpush.bf16.msra.mxu0 %v42
    %46 = vmatpush.bf16.msra.mxu0 %v41
    %47 = vmatpush.bf16.msra.mxu0 %v40
    %48 = vmatpush.bf16.msra.mxu0 %v39
    %49 = vmatpush.bf16.msra.mxu0 %v38
    %50 = vmatpush.bf16.msra.mxu0 %v37
    %51 = vmatpush.bf16.msra.mxu0 %v36
    %52 = vmatpush.bf16.msra.mxu0 %v35
    %53 = vmatmul.bf16.gmra.mxu0 %v34
    %v54 = vpop.f32.mrf.mxu0
    %v55 = vadd.f32 %v44, %v54
    %v56 = vpop.f32.mrf.mxu0
    %57 = vdwg.mxu0
    %v58 = vmax.f32 %v55, 0.0
    %v59 = vld [vmem:[%s1 + $0x80] sm:$0xff]
    %v60 = vld [vmem:[%s1 + $0x88] sm:$0xff]
    %v61 = vld [vmem:[%s1 + $0x90] sm:$0xff]
    %v62 = vld [vmem:[%s1 + $0x98] sm:$0xff]
    %v63 = vld [vmem:[%s1 + $0xa0] sm:$0xff]
    %v64 = vld [vmem:[%s1 + $0xa8] sm:$0xff]
    %v65 = vld [vmem:[%s1 + $0xb0] sm:$0xff]
    %v66 = vld [vmem:[%s1 + $0xb8] sm:$0xff]
    %v67 = vpack.c.bf16 %v58, %v58
    %v68 = vpack.c.bf16 %v60, %v59
    %v69 = vpack.c.bf16 %v62, %v61
    %v70 = vpack.c.bf16 %v64, %v63
    %v71 = vpack.c.bf16 %v66, %v65
    %v72 = vld [vmem:[%s2 + $0x41] sm:$0x1]
    %v73 = vperm.slane %v72, 0
    %vm74 = vcmask 523264
    %v76 = vsel %vm74, %v67, 0
    %78 = vmatpush.bf16.msra.mxu0 0
    %79 = vmatpush.bf16.msra.mxu0 0
    %80 = vmatpush.bf16.msra.mxu0 0
    %81 = vmatpush.bf16.msra.mxu0 0
    %82 = vmatpush.bf16.msra.mxu0 %v71
    %83 = vmatpush.bf16.msra.mxu0 %v70
    %84 = vmatpush.bf16.msra.mxu0 %v69
    %85 = vmatpush.bf16.msra.mxu0 %v68
    %86 = vmatmul.bf16.gmra.mxu0 %v76
    %v87 = vpop.f32.mrf.mxu0
    %v88 = vadd.f32 %v73, %v87
    %v89 = vpop.f32.mrf.mxu0
    %90 = vdwg.mxu0
    %v91 = vmax.f32 %v88, 0.0
    %v92 = vld [vmem:[%s1 + $0xc0] sm:$0xff]
    %v93 = vld [vmem:[%s1 + $0xc8] sm:$0xff]
    %v94 = vld [vmem:[%s1 + $0xd0] sm:$0xff]
    %v95 = vld [vmem:[%s1 + $0xd8] sm:$0xff]
    %v96 = vld [vmem:[%s1 + $0xe0] sm:$0xff]
    %v97 = vld [vmem:[%s1 + $0xe8] sm:$0xff]
    %v98 = vld [vmem:[%s1 + $0xf0] sm:$0xff]
    %v99 = vld [vmem:[%s1 + $0xf8] sm:$0xff]
    %v100 = vld [vmem:[%s2 + $0x42] sm:$0x1]
    %v101 = vperm.slane %v100, 0
    %v103 = vsel %vm74, %v91, 0
    %105 = vmatpush.msra.mxu0 0.0
    %106 = vmatpush.msra.mxu0 0.0
    %107 = vmatpush.msra.mxu0 0.0
    %108 = vmatpush.msra.mxu0 0.0
    %109 = vmatpush.msra.mxu0 0.0
    %110 = vmatpush.msra.mxu0 0.0
    %111 = vmatpush.msra.mxu0 0.0
    %112 = vmatpush.msra.mxu0 0.0
    %113 = vmatpush.msra.mxu0 %v99
    %114 = vmatpush.msra.mxu0 %v98
    %115 = vmatpush.msra.mxu0 %v97
    %116 = vmatpush.msra.mxu0 %v96
    %117 = vmatpush.msra.mxu0 %v95
    %118 = vmatpush.msra.mxu0 %v94
    %119 = vmatpush.msra.mxu0 %v93
    %120 = vmatpush.msra.mxu0 %v92
    %121 = vmatmul.f32.gmra.mxu0 %v103
    %v122 = vpop.f32.mrf.mxu0
    %v123 = vadd.f32 %v101, %v122
    %124 = vdwg.mxu0
    %v125 = vmul.f32 %v123, 0.5
    %v126 = vmul.f32 %v125, 1.442695
    %v127 = vpow.pop %v126
    %129 = vrot.lane.b32.xlu0 %v127, 96
    %v130 = vpop.permute.xlu0 %129
    %v132 = vmul.f32 %v17, %v130
    %v133 = vadd.f32 %v123, %v132
    %v134 = vmax.f32 %v133, 0.0
    %v135 = vld [vmem:[%s1 + $0x100] sm:$0xff]
    %v136 = vld [vmem:[%s1 + $0x108] sm:$0xff]
    %v137 = vld [vmem:[%s1 + $0x110] sm:$0xff]
    %v138 = vld [vmem:[%s1 + $0x118] sm:$0xff]
    %v139 = vpack.c.bf16 %v134, %v134
    %v140 = vpack.c.bf16 %v136, %v135
    %v141 = vpack.c.bf16 %v138, %v137
    %v142 = vld [vmem:[%s2 + $0x43] sm:$0x1]
    %v143 = vperm.slane %v142, 0
    %vm144 = vcmask 261120
    %v146 = vsel %vm144, %v139, 0
    %148 = vmatpush.bf16.msra.mxu0 0
    %149 = vmatpush.bf16.msra.mxu0 0
    %150 = vmatpush.bf16.msra.mxu0 0
    %151 = vmatpush.bf16.msra.mxu0 0
    %152 = vmatpush.bf16.msra.mxu0 0
    %153 = vmatpush.bf16.msra.mxu0 0
    %154 = vmatpush.bf16.msra.mxu0 %v141
    %155 = vmatpush.bf16.msra.mxu0 %v140
    %156 = vmatmul.bf16.gmra.mxu0 %v146
    %v157 = vpop.f32.mrf.mxu0
    %v158 = vadd.f32 %v143, %v157
    %v159 = vpop.f32.mrf.mxu0
    %160 = vdwg.mxu0
    %v161 = vmax.f32 %v158, 0.0
    %v162 = vld [vmem:[%s1 + $0x120] sm:$0xff]
    %v163 = vld [vmem:[%s1 + $0x128] sm:$0xff]
    %v164 = vld [vmem:[%s1 + $0x130] sm:$0xff]
    %v165 = vld [vmem:[%s1 + $0x138] sm:$0xff]
    %v166 = vld [vmem:[%s1 + $0x140] sm:$0xff]
    %v167 = vld [vmem:[%s1 + $0x148] sm:$0xff]
    %v168 = vld [vmem:[%s1 + $0x150] sm:$0xff]
    %v169 = vld [vmem:[%s1 + $0x158] sm:$0xff]
    %v170 = vpack.c.bf16 %v161, %v161
    %v171 = vpack.c.bf16 %v163, %v162
    %v172 = vpack.c.bf16 %v165, %v164
    %v173 = vpack.c.bf16 %v167, %v166
    %v174 = vpack.c.bf16 %v169, %v168
    %v175 = vld [vmem:[%s2 + $0x44] sm:$0x1]
    %v176 = vperm.slane %v175, 0
    %v178 = vsel %vm74, %v170, 0
    %180 = vmatpush.bf16.msra.mxu0 0
    %181 = vmatpush.bf16.msra.mxu0 0
    %182 = vmatpush.bf16.msra.mxu0 0
    %183 = vmatpush.bf16.msra.mxu0 0
    %184 = vmatpush.bf16.msra.mxu0 %v174
    %185 = vmatpush.bf16.msra.mxu0 %v173
    %186 = vmatpush.bf16.msra.mxu0 %v172
    %187 = vmatpush.bf16.msra.mxu0 %v171
    %188 = vmatmul.bf16.gmra.mxu0 %v178
    %v189 = vpop.f32.mrf.mxu0
    %v190 = vadd.f32 %v176, %v189
    %v191 = vpop.f32.mrf.mxu0
    %192 = vdwg.mxu0
    %v193 = vmax.f32 %v190, 0.0
    %v194 = vld [vmem:[%s2] sm:$0xff]
    %v195 = vld [vmem:[%s2 + $0x8] sm:$0xff]
    %v196 = vld [vmem:[%s2 + $0x10] sm:$0xff]
    %v197 = vld [vmem:[%s2 + $0x18] sm:$0xff]
    %v198 = vld [vmem:[%s2 + $0x20] sm:$0xff]
    %v199 = vld [vmem:[%s2 + $0x28] sm:$0xff]
    %v200 = vld [vmem:[%s2 + $0x30] sm:$0xff]
    %v201 = vld [vmem:[%s2 + $0x38] sm:$0xff]
    %v202 = vpack.c.bf16 %v193, %v193
    %v203 = vpack.c.bf16 %v195, %v194
    %v204 = vpack.c.bf16 %v197, %v196
    %v205 = vpack.c.bf16 %v199, %v198
    %v206 = vpack.c.bf16 %v201, %v200
    %v207 = vld [vmem:[%s2 + $0x45] sm:$0x1]
    %v208 = vperm.slane %v207, 0
    %v210 = vsel %vm74, %v202, 0
    %212 = vmatpush.bf16.msra.mxu0 0
    %213 = vmatpush.bf16.msra.mxu0 0
    %214 = vmatpush.bf16.msra.mxu0 0
    %215 = vmatpush.bf16.msra.mxu0 0
    %216 = vmatpush.bf16.msra.mxu0 %v206
    %217 = vmatpush.bf16.msra.mxu0 %v205
    %218 = vmatpush.bf16.msra.mxu0 %v204
    %219 = vmatpush.bf16.msra.mxu0 %v203
    %220 = vmatmul.bf16.gmra.mxu0 %v210
    %v221 = vpop.f32.mrf.mxu0
    %v222 = vadd.f32 %v208, %v221
    %v223 = vpop.f32.mrf.mxu0
    %224 = vdwg.mxu0
    %v225 = vxor.u32 %v222, 2147483648
    %v226 = vmul.f32 %v225, 1.442695
    %v227 = vpow.pop %v226
    %v228 = vadd.f32 %v227, 1.0
    %v229 = vrcp.pop %v228
    %v230 = vmul.f32 %v228, %v229
    %v231 = vsub.f32 1.0, %v230
    %v232 = vmul.f32 %v229, %v231
    %v233 = vadd.f32 %v229, %v232
    %vm234 = vweird.f32 %v228
    %vm235 = vweird.f32 %v229
    %vm236 = vmor %vm234, %vm235
    %v237 = vsel %vm236, %v229, %v233
    %v238 = vand.u32 2147483647, %v228
    %vm239 = vcmp.eq.f32.partialorder %v238, 8.507059e+37
    %v240 = vand.u32 %v228, 2147483648
    %v241 = vor.u32 1.1754944e-38, %v240
    %v242 = vsel %vm239, %v241, %v237
    %v243 = vmul.f32 1.0, %v242
    %244 = vst [vmem:[#allocation2] sm:$0xff] %v243
    %245 = vst [vmem:[#allocation2 + $0x8] sm:$0xff] 0.0
    %246 = vst.msk [vmem:[#allocation2 + $0x8] sm:$0xff] %vm144, %v133
    %248 = vrot.lane.b32.xlu0 %v123, 32
    %v249 = vpop.permute.xlu0 %248
    %vm251 = vcmask 785664
    %252 = vst.msk [vmem:[#allocation2 + $0x8] sm:$0xff] %vm251, %v249
    // Predicated region
    $region14: #{siamese_ae_forward_packed.1} parent=1 // pred_check
      _
    $region15: #{siamese_ae_forward_packed.1} parent=1 // pred_check_branch
      %254 = sbr.rel (0) target = $region17
    $region16: #{siamese_ae_forward_packed.1} parent=1 // pred_region
      %256 = vsyncadd [#allocation3], 0
      %s258 = sshll.u32 [#allocation2], 4
      %s259 = int_to_ptr.vmem [resolvable:$true] %s258
      %s260 = sshll.u32 %s3, 4
      %s261 = int_to_ptr.hbm [resolvable:$true] %s260
      %263 = dma.vmem_to_hbm [thread:$0]  %s259, 256, %s261, [#allocation3]
    $region17: #{siamese_ae_forward_packed.1} parent=1 // pred_fallthru
      _
    // Predicated region
    $region18: #{siamese_ae_forward_packed.1} parent=1 // pred_check
      _
    $region19: #{siamese_ae_forward_packed.1} parent=1 // pred_check_branch
      %265 = sbr.rel (0) target = $region21
    $region20: #{siamese_ae_forward_packed.1} parent=1 // pred_region
      %267 = dma.done [#allocation3], 256
    $region21: #{siamese_ae_forward_packed.1} parent=1 // pred_fallthru
      _
    %268 = vsyncpa [#allocation3], 1

</llo_original>
